<compile_context>
chip_gen: v5e
topology: v5e:2x2
jax: 0.10.0
libtpu: 0.0.40
codegen_flags: <defaults>
</compile_context>

<pallas_src>
import functools

import jax
import jax.numpy as jnp
from jax import lax
from jax.experimental import pallas as pl
from jax.experimental.pallas import tpu as pltpu

_LANES = 128
_SUBLANES = 8
_TILE_ELEMS = _LANES * _SUBLANES           # wrapper padding granule (1024)
_TARGET_BLOCK_BYTES = 2 * 1024 * 1024      # per-stream DMA block target
_MAX_BLOCK_ROWS = 8192                     # cap: f32 in-kernel temps <= 4 MiB
_VMEM_LIMIT_BYTES = 32 * 1024 * 1024       # safe scoped VMEM on v5e/v6e/v7x


def _default_block_rows(rows, itemsize):
    """Dtype-aware block sizing: ~_TARGET_BLOCK_BYTES per input stream."""
    rows_for_bytes = _TARGET_BLOCK_BYTES // (_LANES * itemsize)
    rows_for_bytes = max(_SUBLANES, (rows_for_bytes // _SUBLANES) * _SUBLANES)
    return min(rows, min(_MAX_BLOCK_ROWS, rows_for_bytes))


def _charbonnier_map_kernel(eps, loss_weight, p_ref, t_ref, o_ref):
    """reduction='none': elementwise loss_weight * sqrt((p-t)^2 + eps)."""
    d = p_ref[...].astype(jnp.float32) - t_ref[...].astype(jnp.float32)
    v = jnp.sqrt(d * d + jnp.float32(eps)) * jnp.float32(loss_weight)
    o_ref[...] = v.astype(o_ref.dtype)


def _charbonnier_reduce_kernel(eps, block_rows, steps_per_core, grid_blocks,
                               tail_valid, has_clamped, p_ref, t_ref, o_ref):
    """Accumulate per-core partial sums of sqrt((p-t)^2 + eps) into o_ref.

    o_ref block is (1, 8, 128) f32 and stays VMEM-resident across the inner
    ('arbitrary') grid axis; only VPU adds run in the hot loop.  The tail mask
    runs only on the last real block; duplicated clamped steps are skipped.
    """
    c = pl.program_id(0)          # core split axis ('parallel')
    i = pl.program_id(1)          # block axis      ('arbitrary')
    step = c * steps_per_core + i
    block_elems = block_rows * _LANES

    @pl.when(i == 0)
    def _init():
        o_ref[...] = jnp.zeros_like(o_ref)

    def _loss():
        d = p_ref[...].astype(jnp.float32) - t_ref[...].astype(jnp.float32)
        return jnp.sqrt(d * d + jnp.float32(eps))

    def _accumulate(v):
        partial = v.reshape(block_rows // _SUBLANES, _SUBLANES,
                            _LANES).sum(axis=0)
        o_ref[...] += partial[None, :, :]

    if tail_valid != block_elems:
        # Last real block contains padded / out-of-range elements -> mask it.
        # Block-local static threshold: no global index math, no overflow.
        @pl.when(step < grid_blocks - 1)
        def _full_blocks():
            _accumulate(_loss())

        @pl.when(step == grid_blocks - 1)
        def _tail_block():
            v = _loss()
            elem = (lax.broadcasted_iota(jnp.int32, v.shape, 0) * _LANES
                    + lax.broadcasted_iota(jnp.int32, v.shape, 1))
            _accumulate(jnp.where(elem < tail_valid, v, jnp.float32(0.0)))
        # Steps >= grid_blocks (clamped duplicates) fall through: no accumulate.
    elif has_clamped:
        @pl.when(step < grid_blocks)
        def _real_blocks():
            _accumulate(_loss())
    else:
        _accumulate(_loss())


def _as_lane_slab(x_flat, padded_len):
    """(padded_len//128, 128) view. Free reshape when no padding is needed."""
    pad = padded_len - x_flat.shape[0]
    if pad:
        # TODO(synk): ragged numel (not a multiple of 1024) costs one extra
        # full-tensor pad copy here (extra HBM read+write per input); common
        # NCHW sizes take the zero-copy reshape path.
        x_flat = jnp.pad(x_flat, (0, pad))
    return x_flat.reshape(padded_len // _LANES, _LANES)


def charbonnier_loss_pallas(pred, target, loss_weight=1.0, reduction="mean",
                            eps=1e-12, block_rows=None):
    """Charbonnier loss forward (weight=None). pred/target: (N, C, H, W)."""
    assert pred.shape == target.shape
    if reduction not in ("none", "mean", "sum"):
        raise ValueError(f"Unsupported reduction mode: {reduction}")

    orig_shape = pred.shape
    n_elem = pred.size
    itemsize = pred.dtype.itemsize

    # Keep native dtype (bf16 stays bf16 on the wire); upcast inside kernel.
    p_flat = pred.reshape(-1)
    t_flat = target.reshape(-1)

    padded = ((n_elem + _TILE_ELEMS - 1) // _TILE_ELEMS) * _TILE_ELEMS
    rows = padded // _LANES                               # multiple of 8
    if block_rows is None:
        block_rows = _default_block_rows(rows, itemsize)  # multiple of 8
    else:
        block_rows = min(block_rows, rows)
    grid_blocks = pl.cdiv(rows, block_rows)

    p2d = _as_lane_slab(p_flat, padded)
    t2d = _as_lane_slab(t_flat, padded)

    if reduction == "none":
        tile_spec = pl.BlockSpec((block_rows, _LANES), lambda i: (i, 0))
        out2d = pl.pallas_call(
            functools.partial(_charbonnier_map_kernel, eps, loss_weight),
            out_shape=jax.ShapeDtypeStruct((rows, _LANES), pred.dtype),
            grid_spec=pltpu.PrefetchScalarGridSpec(
                num_scalar_prefetch=0,
                grid=(grid_blocks,),
                in_specs=[tile_spec, tile_spec],
                out_specs=tile_spec,
            ),
            compiler_params=pltpu.CompilerParams(
                dimension_semantics=("parallel",),
                vmem_limit_bytes=_VMEM_LIMIT_BYTES),
            cost_estimate=pl.CostEstimate(
                flops=3 * n_elem,
                transcendentals=n_elem,
                bytes_accessed=3 * n_elem * itemsize),
        )(p2d, t2d)
        return out2d.reshape(-1)[:n_elem].reshape(orig_shape)

    # ---- 'mean' / 'sum': in-kernel reduction with per-core partial sums ----
    n_cores = 2 if grid_blocks >= 2 else 1        # 2-way split helps on v7x
    steps_per_core = pl.cdiv(grid_blocks, n_cores)
    has_clamped = n_cores * steps_per_core > grid_blocks
    # Valid elements inside the last real block (all padding lands there).
    tail_valid = n_elem - (grid_blocks - 1) * block_rows * _LANES

    if has_clamped:
        # Duplicated trailing steps re-fetch the last real block; their
        # contribution is skipped inside the kernel via pl.when.
        def in_map(c, i):
            return (jnp.minimum(c * steps_per_core + i, grid_blocks - 1), 0)
    else:
        def in_map(c, i):
            return (c * steps_per_core + i, 0)

    in_spec = pl.BlockSpec((block_rows, _LANES), in_map)
    out_spec = pl.BlockSpec((1, _SUBLANES, _LANES), lambda c, i: (c, 0, 0))

    partials = pl.pallas_call(
        functools.partial(_charbonnier_reduce_kernel, eps, block_rows,
                          steps_per_core, grid_blocks, tail_valid,
                          has_clamped),
        out_shape=jax.ShapeDtypeStruct((n_cores, _SUBLANES, _LANES),
                                       jnp.float32),
        grid_spec=pltpu.PrefetchScalarGridSpec(
            num_scalar_prefetch=0,
            grid=(n_cores, steps_per_core),
            in_specs=[in_spec, in_spec],
            out_specs=out_spec,
        ),
        compiler_params=pltpu.CompilerParams(
            dimension_semantics=("parallel", "arbitrary"),
            vmem_limit_bytes=_VMEM_LIMIT_BYTES),
        cost_estimate=pl.CostEstimate(
            flops=4 * n_elem,
            transcendentals=n_elem,
            bytes_accessed=2 * n_elem * itemsize),
    )(p2d, t2d)

    # TODO(synk): the final cross-lane reduce could be folded into the last
    # grid step to save one tiny trailing XLA op; kept in the wrapper for
    # simplicity (it reduces only n_cores*1024 f32 values).
    total = jnp.sum(partials)
    if reduction == "mean":
        reduced = total / jnp.float32(n_elem)
    else:  # "sum"
        reduced = total
    return (loss_weight * reduced).astype(pred.dtype)


class CharbonnierLossPallas:
    """Mirror of the PyTorch module (weight=None forward path)."""

    def __init__(self, loss_weight=1.0, reduction="mean", sample_wise=False,
                 eps=1e-12):
        if reduction not in ["none", "mean", "sum"]:
            raise ValueError(f"Unsupported reduction mode: {reduction}")
        self.loss_weight = loss_weight
        self.reduction = reduction
        self.sample_wise = sample_wise  # only matters when weight is given
        self.eps = eps

    def __call__(self, pred, target, weight=None):
        # TODO(synk): element-wise `weight` (masked_loss) / sample_wise path
        # not implemented; weight=None reproduces the default forward exactly.
        assert weight is None
        return charbonnier_loss_pallas(
            pred, target, loss_weight=self.loss_weight,
            reduction=self.reduction, eps=self.eps)


if __name__ == "__main__":
    key = jax.random.PRNGKey(0)
    kp, kt = jax.random.split(key)
    N, C, H, W = 2, 4, 16, 16
    pred = jax.random.normal(kp, (N, C, H, W), jnp.float32)
    target = jax.random.normal(kt, (N, C, H, W), jnp.float32)
    eps = 1e-12

    def ref_elem(p, t):
        return jnp.sqrt((p.astype(jnp.float32) - t.astype(jnp.float32)) ** 2
                        + eps)

    # mean
    out = CharbonnierLossPallas(loss_weight=1.0, reduction="mean")(pred, target)
    out = jax.block_until_ready(out)
    assert jnp.allclose(out, jnp.mean(ref_elem(pred, target)),
                        rtol=1e-5, atol=1e-6)

    # sum
    out_sum = CharbonnierLossPallas(reduction="sum")(pred, target)
    out_sum = jax.block_until_ready(out_sum)
    assert jnp.allclose(out_sum, jnp.sum(ref_elem(pred, target)),
                        rtol=1e-5, atol=1e-5)

    # none (elementwise)
    out_none = CharbonnierLossPallas(reduction="none")(pred, target)
    out_none = jax.block_until_ready(out_none)
    assert out_none.shape == (N, C, H, W)
    assert jnp.allclose(out_none, ref_elem(pred, target), rtol=1e-5, atol=1e-6)

    # ragged size -> exercises the last-block tail mask (single block)
    kp2, kt2 = jax.random.split(jax.random.PRNGKey(1))
    p2 = jax.random.normal(kp2, (2, 3, 5, 7), jnp.float32)
    t2 = jax.random.normal(kt2, (2, 3, 5, 7), jnp.float32)
    out2 = CharbonnierLossPallas(reduction="mean")(p2, t2)
    out2 = jax.block_until_ready(out2)
    assert jnp.allclose(out2, jnp.mean(ref_elem(p2, t2)), rtol=1e-5, atol=1e-6)

    # multi-block, odd block count -> exercises 2-way core split + clamped
    # duplicated step guard (block_rows override keeps the test tensor small).
    kp3, kt3 = jax.random.split(jax.random.PRNGKey(2))
    p3 = jax.random.normal(kp3, (2, 8, 160, 128), jnp.float32)
    t3 = jax.random.normal(kt3, (2, 8, 160, 128), jnp.float32)
    out3 = charbonnier_loss_pallas(p3, t3, reduction="mean", eps=eps,
                                   block_rows=512)
    out3 = jax.block_until_ready(out3)
    assert jnp.allclose(out3, jnp.mean(ref_elem(p3, t3)), rtol=1e-5, atol=1e-6)

    # multi-block, even block count with ragged last block -> gated tail mask
    kp4, kt4 = jax.random.split(jax.random.PRNGKey(3))
    p4 = jax.random.normal(kp4, (2, 8, 100, 128), jnp.float32)
    t4 = jax.random.normal(kt4, (2, 8, 100, 128), jnp.float32)
    out4 = charbonnier_loss_pallas(p4, t4, reduction="sum", eps=eps,
                                   block_rows=512)
    out4 = jax.block_until_ready(out4)
    assert jnp.allclose(out4, jnp.sum(ref_elem(p4, t4)), rtol=1e-5, atol=1e-3)

    # multi-block elementwise path
    out5 = charbonnier_loss_pallas(p3, t3, reduction="none", eps=eps,
                                   block_rows=512)
    out5 = jax.block_until_ready(out5)
    assert jnp.allclose(out5, ref_elem(p3, t3), rtol=1e-5, atol=1e-6)

    # bf16 inputs -> dtype-aware block sizing + in-kernel upcast
    p6 = pred.astype(jnp.bfloat16)
    t6 = target.astype(jnp.bfloat16)
    out6 = CharbonnierLossPallas(reduction="mean")(p6, t6)
    out6 = jax.block_until_ready(out6)
    assert jnp.allclose(jnp.float32(out6), jnp.mean(ref_elem(p6, t6)),
                        rtol=2e-2, atol=1e-3)

    print("KERNEL_OK")
</pallas_src>

<mosaic_0001>
module attributes {stable_mosaic.version = 11 : i64} {
  func.func @_charbonnier_reduce_kernel(%arg0: i32, %arg1: i32, %arg2: memref<16x128xf32, #tpu.memory_space<vmem>>, %arg3: memref<16x128xf32, #tpu.memory_space<vmem>>, %arg4: memref<1x8x128xf32, #tpu.memory_space<vmem>>) attributes {dimension_semantics = [#tpu.dimension_semantics<parallel>, #tpu.dimension_semantics<arbitrary>], iteration_bounds = array<i64: 1, 1>, scalar_prefetch = 0 : i64, scratch_operands = 0 : i64, tpu.core_type = #tpu.core_type<tc>, window_params = [{transform_indices = @transform_0, window_bounds = array<i64: 16, 128>}, {transform_indices = @transform_1, window_bounds = array<i64: 16, 128>}, {transform_indices = @transform_2, window_bounds = array<i64: 1, 8, 128>}]} {
    %c0_i32 = arith.constant 0 : i32
    %0 = arith.cmpi eq, %arg1, %c0_i32 : i32
    %1 = arith.extui %0 : i1 to i32
    %c0_i32_0 = arith.constant 0 : i32
    %2 = arith.cmpi ne, %1, %c0_i32_0 : i32
    scf.if %2 {
      %cst_11 = arith.constant 0.000000e+00 : f32
      %16 = vector.broadcast %cst_11 : f32 to vector<1x8x128xf32>
      %c0_12 = arith.constant 0 : index
      %c0_13 = arith.constant 0 : index
      %c0_14 = arith.constant 0 : index
      %17 = vector.load %arg4[%c0_12, %c0_13, %c0_14] : memref<1x8x128xf32, #tpu.memory_space<vmem>>, vector<1x8x128xf32>
      tpu.vector_store %arg4[%c0_12, %c0_13, %c0_14], %16 {strides = array<i32>} : memref<1x8x128xf32, #tpu.memory_space<vmem>>, vector<1x8x128xf32>,
    } else {
    }
    %c0 = arith.constant 0 : index
    %c0_1 = arith.constant 0 : index
    %3 = vector.load %arg2[%c0, %c0_1] : memref<16x128xf32, #tpu.memory_space<vmem>>, vector<16x128xf32>
    %c0_2 = arith.constant 0 : index
    %c0_3 = arith.constant 0 : index
    %4 = vector.load %arg3[%c0_2, %c0_3] : memref<16x128xf32, #tpu.memory_space<vmem>>, vector<16x128xf32>
    %5 = arith.subf %3, %4 : vector<16x128xf32>
    %6 = arith.mulf %5, %5 : vector<16x128xf32>
    %cst = arith.constant 9.99999996E-13 : f32
    %7 = vector.broadcast %cst : f32 to vector<16x128xf32>
    %8 = arith.addf %6, %7 : vector<16x128xf32>
    %9 = math.sqrt %8 : vector<16x128xf32>
    %10 = vector.shape_cast %9 : vector<16x128xf32> to vector<2x8x128xf32>
    %cst_4 = arith.constant dense<0.000000e+00> : vector<8x128xf32>
    %11 = vector.multi_reduction <add>, %10, %cst_4 [0] : vector<2x8x128xf32> to vector<8x128xf32>
    %c0_5 = arith.constant 0 : index
    %c0_6 = arith.constant 0 : index
    %c0_7 = arith.constant 0 : index
    %12 = vector.load %arg4[%c0_5, %c0_6, %c0_7] : memref<1x8x128xf32, #tpu.memory_space<vmem>>, vector<1x8x128xf32>
    %13 = vector.shape_cast %11 : vector<8x128xf32> to vector<1x8x128xf32>
    %14 = arith.addf %12, %13 : vector<1x8x128xf32>
    %c0_8 = arith.constant 0 : index
    %c0_9 = arith.constant 0 : index
    %c0_10 = arith.constant 0 : index
    %15 = vector.load %arg4[%c0_8, %c0_9, %c0_10] : memref<1x8x128xf32, #tpu.memory_space<vmem>>, vector<1x8x128xf32>
    tpu.vector_store %arg4[%c0_8, %c0_9, %c0_10], %14 {strides = array<i32>} : memref<1x8x128xf32, #tpu.memory_space<vmem>>, vector<1x8x128xf32>,
    return
  }
  func.func @transform_0(%arg0: i32, %arg1: i32) -> (i32, i32) {
    %c1_i32 = arith.constant 1 : i32
    %0 = arith.muli %arg0, %c1_i32 : i32
    %1 = arith.addi %0, %arg1 : i32
    %c0_i32 = arith.constant 0 : i32
    %c0_i32_0 = arith.constant 0 : i32
    return %1, %c0_i32 : i32, i32
  }
  func.func @transform_1(%arg0: i32, %arg1: i32) -> (i32, i32) {
    %c1_i32 = arith.constant 1 : i32
    %0 = arith.muli %arg0, %c1_i32 : i32
    %1 = arith.addi %0, %arg1 : i32
    %c0_i32 = arith.constant 0 : i32
    %c0_i32_0 = arith.constant 0 : i32
    return %1, %c0_i32 : i32, i32
  }
  func.func @transform_2(%arg0: i32, %arg1: i32) -> (i32, i32, i32) {
    %c0_i32 = arith.constant 0 : i32
    %c0_i32_0 = arith.constant 0 : i32
    %c0_i32_1 = arith.constant 0 : i32
    return %arg0, %c0_i32, %c0_i32_0 : i32, i32, i32
  }
}

</mosaic_0001>

<llo_original>
// kernel: tpu_custom_call.1
$region0: #{tpu_custom_call.1}
  #allocation0 [shape = 'u32[]', space=smem, size = 0x4, offset = 0x4, fixed_abs, tag = 'smem constant byte address 0x4 - core index']
  #allocation1 [shape = 'u32[72,128]{1,0:T(1,128)}', space=vmem, size = 0x9000, scoped, tag = 'internal scratch']
  %s0 = inlined_call_operand.hbm [shape: f32[16,128], index: 0, kind: input, shape index: {}]
  %s1 = inlined_call_operand.hbm [shape: f32[16,128], index: 1, kind: input, shape index: {}]
  %s2 = inlined_call_operand.hbm [shape: f32[1,8,128], index: 2, kind: output, shape index: {}]
  %s3 = sld [smem:[#allocation0]]
  $region30: #{tpu_custom_call.1} parent=0
    _
  %s5 = ssub.s32 1, %s3
  %s6 = scalar_select 0, %s5, %s3
  $region1: #{tpu_custom_call.1} parent=0
    #allocation2 [shape = 'u8[8192]{0}', space=vmem, size = 0x2000, scoped, tag = 'input window, operand 0, single buffered']
    #allocation3 [shape = 's32[1]{0}', space=sflag, size = 0x4, scoped, tag = 'scoped memory for tpu_custom_call.1']
    #allocation4 [shape = 's32[1]{0}', space=sflag, size = 0x4, scoped, tag = 'scoped memory for tpu_custom_call.1']
    #allocation5 [shape = 'u8[8192]{0}', space=vmem, size = 0x2000, scoped, tag = 'input window, operand 1, single buffered']
    #allocation6 [shape = 's32[1]{0}', space=sflag, size = 0x4, scoped, tag = 'scoped memory for tpu_custom_call.1']
    #allocation7 [shape = 'u8[4096]{0}', space=vmem, size = 0x1000, scoped, tag = 'output window, operand 0, single buffered']
    %7 = vsyncpa [#allocation3], 0
    %8 = vsyncpa [#allocation6], 0
    %9 = vsyncpa [#allocation4], 0
    // Predicated region
    $region2: #{tpu_custom_call.1} parent=1 // pred_check
      _
    $region3: #{tpu_custom_call.1} parent=1 // pred_check_branch
      %11 = sbr.rel (0) target = $region5
    $region4: #{tpu_custom_call.1} parent=1 // pred_region
      %s12 = sadd.s32 0, 0
      %s13 = smul.u32 2, %s12
      %15 = vsyncadd [#allocation3], 0
      %s16 = smul.addr %s13, 8
      %s17 = scalar_lea.hbm %s0, %s16
      %s18 = sshll.u32 %s17, 4
      %s19 = int_to_ptr.hbm [resolvable:$true] %s18
      %s20 = sshll.u32 [#allocation2], 4
      %s21 = int_to_ptr.vmem [resolvable:$true] %s20
      %26 = dma.hbm_to_vmem [thread:$0]  %s19, 256, %s21, [#allocation3], 128, 128, 8
    $region5: #{tpu_custom_call.1} parent=1 // pred_fallthru
      _
    // Predicated region
    $region6: #{tpu_custom_call.1} parent=1 // pred_check
      _
    $region7: #{tpu_custom_call.1} parent=1 // pred_check_branch
      %28 = sbr.rel (0) target = $region9
    $region8: #{tpu_custom_call.1} parent=1 // pred_region
      %s29 = sadd.s32 0, 0
      %s30 = smul.u32 2, %s29
      %32 = vsyncadd [#allocation6], 0
      %s33 = smul.addr %s30, 8
      %s34 = scalar_lea.hbm %s1, %s33
      %s35 = sshll.u32 %s34, 4
      %s36 = int_to_ptr.hbm [resolvable:$true] %s35
      %s37 = sshll.u32 [#allocation5], 4
      %s38 = int_to_ptr.vmem [resolvable:$true] %s37
      %43 = dma.hbm_to_vmem [thread:$0]  %s36, 256, %s38, [#allocation6], 128, 128, 8
    $region9: #{tpu_custom_call.1} parent=1 // pred_fallthru
      _
    // Predicated region
    $region10: #{tpu_custom_call.1} parent=1 // pred_check
      _
    $region11: #{tpu_custom_call.1} parent=1 // pred_check_branch
      %45 = sbr.rel (0) target = $region13
    $region12: #{tpu_custom_call.1} parent=1 // pred_region
      %47 = dma.done [#allocation3], 256
    $region13: #{tpu_custom_call.1} parent=1 // pred_fallthru
      _
    // Predicated region
    $region14: #{tpu_custom_call.1} parent=1 // pred_check
      _
    $region15: #{tpu_custom_call.1} parent=1 // pred_check_branch
      %49 = sbr.rel (0) target = $region17
    $region16: #{tpu_custom_call.1} parent=1 // pred_region
      %51 = dma.done [#allocation6], 256
    $region17: #{tpu_custom_call.1} parent=1 // pred_fallthru
      _
    %s52 = sadd.s32 0, 0
    %s53 = smul.u32 2, %s52
    %s54 = sadd.s32 0, 0
    %s55 = smul.u32 2, %s54
    %p56 = scmp.eq.s32.totalorder 0, 0
    // Predicated region
    $region18: #{tpu_custom_call.1} parent=1 // pred_check
      %p57 = pneg %p56
    $region19: #{tpu_custom_call.1} parent=1 // pred_check_branch
      %59 = sbr.rel (%p57) target = $region21
    $region20: #{tpu_custom_call.1} parent=1 // pred_region
      %60 = vst [vmem:[#allocation7] sm:$0xff] 0.0
    $region21: #{tpu_custom_call.1} parent=1 // pred_fallthru
      _
    %v61 = vld [vmem:[#allocation2] sm:$0xff]
    %v62 = vld [vmem:[#allocation2 + $0x8] sm:$0xff]
    %v63 = vld [vmem:[#allocation5] sm:$0xff]
    %v64 = vld [vmem:[#allocation5 + $0x8] sm:$0xff]
    %v65 = vsub.f32 %v61, %v63
    %v66 = vsub.f32 %v62, %v64
    %v67 = vmul.f32 %v65, %v65
    %v68 = vmul.f32 %v66, %v66
    %v69 = vadd.f32 %v67, 1e-12
    %v70 = vadd.f32 %v68, 1e-12
    %v71 = vrsqrt.pop %v69
    %v72 = vmul.f32 %v71, %v69
    %v73 = vmul.f32 %v72, %v71
    %v74 = vmul.f32 0.5, %v73
    %v75 = vsub.f32 1.5, %v74
    %v76 = vmul.f32 %v71, %v75
    %v77 = vmul.f32 %v69, %v76
    %vm78 = vcmp.eq.f32.partialorder %v69, inf
    %v79 = vsel %vm78, %v69, %v77
    %vm80 = vcmp.eq.f32.partialorder %v69, 0.0
    %v81 = vand.u32 %v69, 2147483648
    %v82 = vsel %vm80, %v81, %v79
    %v83 = vrsqrt.pop %v70
    %v84 = vmul.f32 %v83, %v70
    %v85 = vmul.f32 %v84, %v83
    %v86 = vmul.f32 0.5, %v85
    %v87 = vsub.f32 1.5, %v86
    %v88 = vmul.f32 %v83, %v87
    %v89 = vmul.f32 %v70, %v88
    %vm90 = vcmp.eq.f32.partialorder %v70, inf
    %v91 = vsel %vm90, %v70, %v89
    %vm92 = vcmp.eq.f32.partialorder %v70, 0.0
    %v93 = vand.u32 %v70, 2147483648
    %v94 = vsel %vm92, %v93, %v91
    %v95 = vadd.f32 %v82, %v94
    %v96 = vld [vmem:[#allocation7] sm:$0xff]
    %v97 = vadd.f32 %v96, %v95
    %98 = vst [vmem:[#allocation7] sm:$0xff] %v97
    // Predicated region
    $region22: #{tpu_custom_call.1} parent=1 // pred_check
      _
    $region23: #{tpu_custom_call.1} parent=1 // pred_check_branch
      %100 = sbr.rel (0) target = $region25
    $region24: #{tpu_custom_call.1} parent=1 // pred_region
      %102 = vsyncadd [#allocation4], 0
      %s104 = sshll.u32 [#allocation7], 4
      %s105 = int_to_ptr.vmem [resolvable:$true] %s104
      %s106 = sshll.u32 %s2, 4
      %s107 = int_to_ptr.hbm [resolvable:$true] %s106
      %109 = dma.vmem_to_hbm [thread:$0]  %s105, 128, %s107, [#allocation4]
    $region25: #{tpu_custom_call.1} parent=1 // pred_fallthru
      _
    // Predicated region
    $region26: #{tpu_custom_call.1} parent=1 // pred_check
      _
    $region27: #{tpu_custom_call.1} parent=1 // pred_check_branch
      %111 = sbr.rel (0) target = $region29
    $region28: #{tpu_custom_call.1} parent=1 // pred_region
      %113 = dma.done [#allocation4], 128
    $region29: #{tpu_custom_call.1} parent=1 // pred_fallthru
      _
    %114 = vsyncpa [#allocation3], 1
    %115 = vsyncpa [#allocation6], 1
    %116 = vsyncpa [#allocation4], 1

</llo_original>
